<compile_context>
chip_gen: v5e
topology: v5e:2x2
jax: 0.10.0
libtpu: 0.0.40
codegen_flags: <defaults>
</compile_context>

<pallas_src>
import functools

import jax
import jax.numpy as jnp
from jax import lax
from jax.experimental import pallas as pl
from jax.experimental.pallas import tpu as pltpu

_LANE = 128
_SUBLANE = 8


def _round_up(a: int, m: int) -> int:
    return (a + m - 1) // m * m


def _vmem_limit_bytes() -> int:
    """Per-generation scoped-VMEM budget (v7x: 64 MiB phys -> 48 MiB; v5e/v6e: 96 MiB)."""
    try:
        cap = int(pltpu.get_tpu_info().vmem_capacity_bytes)
    except Exception:
        cap = 64 * 1024 * 1024  # conservative: v7x physical per-TC VMEM
    return int(min(cap * 3 // 4, 96 * 1024 * 1024))


def _choose_row_tile(N: int, Cp: int, itemsize: int,
                     vmem_limit: int, resident_bytes: int) -> int:
    """Pick the row-tile size: as fat as VMEM allows, >=2 grid steps for large N."""
    # x and out tiles are double-buffered -> 4 live (tn, Cp) tiles at once.
    avail = max(vmem_limit - resident_bytes - (2 << 20), 4 * Cp * itemsize * _SUBLANE)
    tn_cap = max(_SUBLANE, (avail // (4 * Cp * itemsize)) // _SUBLANE * _SUBLANE)
    if N <= 1024:
        return N  # single fat block == full array; one pipeline step
    # >=2 steps so v7x's two TensorCores can split the (parallel) row axis,
    # capped by the VMEM budget and a sane maximum.
    tn = min(tn_cap, _round_up(pl.cdiv(N, 2), _SUBLANE), 8192)
    return max(tn, _SUBLANE)


def _fused_linear_kernel(x_ref, w_ref, b_ref, o_ref, *, num_layers: int):
    # x_ref: (tn, Cp)       one fat tile of input rows (lane-dense channels)
    # w_ref: (L, Cp, Cp)    resident, already transposed to (in, out) layout
    # b_ref: (L, 1, Cp)     resident bias rows (f32)
    # o_ref: (tn, Cp)
    h = x_ref[...].astype(jnp.float32)
    for l in range(num_layers):          # static unrolled layer chain
        h = jnp.dot(h, w_ref[l], preferred_element_type=jnp.float32)
        h = h + b_ref[l]                 # (1, Cp) broadcast, f32
        if l < num_layers - 1:
            h = jnp.maximum(h, 0.0)      # fused ReLU (all but last layer)
    o_ref[...] = h.astype(o_ref.dtype)


def _linear_chain_xla(x, weights, biases):
    """Plain-XLA path for tiny problems (kernel overhead > total work)."""
    out = x
    L = len(weights)
    for i, (w, b) in enumerate(zip(weights, biases)):
        out = out @ w.T + b
        if i < L - 1:
            out = jnp.maximum(out, 0.0)
    return out


def linear_mat_forward(x: jax.Array, weights, biases, *, use_pallas=None) -> jax.Array:
    """Pallas equivalent of LinearMat.forward.

    x: (N, C).  weights/biases: per-layer lists in PyTorch nn.Linear layout
    ((out, in) weights, (out,) biases).  ReLU after every layer but the last.
    """
    N, C = x.shape
    L = len(weights)
    assert L >= 1 and len(biases) == L
    for w, b in zip(weights, biases):
        assert w.shape == (C, C), "LinearMat uses square C x C layers"
        assert b.shape == (C,)

    if use_pallas is None:
        # Below a few hundred K elements, a fused XLA chain beats any Pallas call.
        use_pallas = (N * C) >= (1 << 18)
    if not use_pallas:
        return _linear_chain_xla(x, weights, biases)

    # --- prepare lane-dense, resident parameters ----------------------------
    Cp = _round_up(max(C, _LANE), _LANE)          # pad channels to full lanes
    pad = Cp - C
    xp = jnp.pad(x, ((0, 0), (0, pad))) if pad else x
    # Pre-transpose once: (out,in) -> (in,out), then zero-pad to (Cp, Cp).
    w_list = []
    for w in weights:
        wt = jnp.transpose(w)
        if pad:
            wt = jnp.pad(wt, ((0, pad), (0, pad)))
        w_list.append(wt)
    w_stack = jnp.stack(w_list).astype(x.dtype)                       # (L, Cp, Cp)
    b_list = []
    for b in biases:
        bp = jnp.pad(b, (0, pad)) if pad else b
        b_list.append(bp.reshape(1, Cp))
    b_stack = jnp.stack(b_list).astype(jnp.float32)                   # (L, 1, Cp)

    itemsize = jnp.dtype(x.dtype).itemsize
    vmem_limit = _vmem_limit_bytes()
    resident = (w_stack.size * jnp.dtype(w_stack.dtype).itemsize
                + b_stack.size * 4)
    tn = _choose_row_tile(N, Cp, itemsize, vmem_limit, resident)
    grid = (pl.cdiv(N, tn),)

    cost = pl.CostEstimate(
        flops=2 * N * Cp * Cp * L,
        transcendentals=0,
        bytes_accessed=(2 * N * Cp * itemsize                  # x in + out
                        + w_stack.size * jnp.dtype(w_stack.dtype).itemsize
                        + b_stack.size * 4),
    )

    out_p = pl.pallas_call(
        functools.partial(_fused_linear_kernel, num_layers=L),
        out_shape=jax.ShapeDtypeStruct((N, Cp), x.dtype),
        grid_spec=pltpu.PrefetchScalarGridSpec(
            num_scalar_prefetch=0,
            grid=grid,
            in_specs=[
                # input rows: lane-dense (padded channels last), tiled on rows only
                pl.BlockSpec((tn, Cp), lambda i: (i, 0)),
                # stacked weights: constant index_map -> resident, no re-DMA per step
                pl.BlockSpec((L, Cp, Cp), lambda i: (0, 0, 0)),
                # stacked biases: resident
                pl.BlockSpec((L, 1, Cp), lambda i: (0, 0, 0)),
            ],
            out_specs=pl.BlockSpec((tn, Cp), lambda i: (i, 0)),
        ),
        compiler_params=pltpu.CompilerParams(
            # Row axis is embarrassingly parallel; with >=2 grid steps (large N)
            # this shards across v7x's two TensorCores, no-op on v5e/v6e.
            dimension_semantics=("parallel",),
            vmem_limit_bytes=vmem_limit,
        ),
        cost_estimate=cost,
    )(xp, w_stack, b_stack)

    return out_p[:, :C] if pad else out_p


# ----------------------------- self-test -------------------------------------
def _ref_forward(x, weights, biases):
    out = x
    for i, (w, b) in enumerate(zip(weights, biases)):
        out = jnp.dot(out, w.T, precision=lax.Precision.HIGHEST) + b
        if i < len(weights) - 1:
            out = jnp.maximum(out, 0.0)
    return out


def _close(got, want, tol=1e-3):
    scale = float(jnp.maximum(jnp.max(jnp.abs(want)), 1e-6))
    return float(jnp.max(jnp.abs(got - want))) <= tol * scale


def _make_params(key, C, L, init_value=1.0 / 1000):
    """Mimic LinearMat's init: hidden layers N(0, 0.01), last layer eye*iv + noise."""
    ws, bs = [], []
    for i in range(L):
        key, kw = jax.random.split(key)
        if i == L - 1:
            w = (jnp.eye(C, dtype=jnp.float32) * init_value
                 + jax.random.normal(kw, (C, C), jnp.float32) * init_value * 1e-3)
        else:
            w = jax.random.normal(kw, (C, C), jnp.float32) * 0.01
        ws.append(w)
        bs.append(jnp.zeros((C,), jnp.float32))
    return key, ws, bs


if __name__ == "__main__":
    key = jax.random.PRNGKey(0)

    # Test 1: default module config (num_layers=1), tiny N x C, forced Pallas path.
    key, kx = jax.random.split(key)
    x1 = jax.random.normal(kx, (8, 32), jnp.float32)
    key, ws1, bs1 = _make_params(key, 32, 1)
    out1 = jax.block_until_ready(linear_mat_forward(x1, ws1, bs1, use_pallas=True))
    assert out1.shape == (8, 32)
    assert _close(out1, _ref_forward(x1, ws1, bs1)), "L=1 mismatch"

    # Test 2: fused multi-layer chain (num_layers=3) with in-kernel ReLUs.
    key, kx = jax.random.split(key)
    x2 = jax.random.normal(kx, (64, 32), jnp.float32)
    key, ws2, bs2 = _make_params(key, 32, 3)
    out2 = jax.block_until_ready(linear_mat_forward(x2, ws2, bs2, use_pallas=True))
    assert out2.shape == (64, 32)
    assert _close(out2, _ref_forward(x2, ws2, bs2)), "L=3 mismatch"

    # Test 3: multi-step row grid (>=2 parallel steps) with a partial last tile.
    key, kx = jax.random.split(key)
    x3 = jax.random.normal(kx, (2056, 64), jnp.float32)
    key, ws3, bs3 = _make_params(key, 64, 2)
    out3 = jax.block_until_ready(linear_mat_forward(x3, ws3, bs3, use_pallas=True))
    assert out3.shape == (2056, 64)
    assert _close(out3, _ref_forward(x3, ws3, bs3)), "multi-step grid mismatch"

    # Test 4: auto-dispatch picks the XLA path at toy sizes (semantics identical).
    out4 = jax.block_until_ready(linear_mat_forward(x1, ws1, bs1))
    assert _close(out4, _ref_forward(x1, ws1, bs1)), "XLA fallback mismatch"

    print("KERNEL_OK")
</pallas_src>

<mosaic_0001>
module attributes {stable_mosaic.version = 11 : i64} {
  func.func @_fused_linear_kernel(%arg0: i32, %arg1: memref<8x128xf32, #tpu.memory_space<vmem>>, %arg2: memref<1x128x128xf32, #tpu.memory_space<vmem>>, %arg3: memref<1x1x128xf32, #tpu.memory_space<vmem>>, %arg4: memref<8x128xf32, #tpu.memory_space<vmem>>) attributes {dimension_semantics = [#tpu.dimension_semantics<parallel>], iteration_bounds = array<i64: 1>, scalar_prefetch = 0 : i64, scratch_operands = 0 : i64, tpu.core_type = #tpu.core_type<tc>, window_params = [{transform_indices = @transform_0, window_bounds = array<i64: 8, 128>}, {pipeline_mode = #tpu.pipeline_mode<synchronous>, transform_indices = @transform_1, window_bounds = array<i64: 1, 128, 128>}, {pipeline_mode = #tpu.pipeline_mode<synchronous>, transform_indices = @transform_2, window_bounds = array<i64: 1, 1, 128>}, {transform_indices = @transform_3, window_bounds = array<i64: 8, 128>}]} {
    %c0 = arith.constant 0 : index
    %c0_0 = arith.constant 0 : index
    %0 = vector.load %arg1[%c0, %c0_0] : memref<8x128xf32, #tpu.memory_space<vmem>>, vector<8x128xf32>
    %c0_1 = arith.constant 0 : index
    %c0_2 = arith.constant 0 : index
    %c0_3 = arith.constant 0 : index
    %1 = vector.load %arg2[%c0_1, %c0_2, %c0_3] : memref<1x128x128xf32, #tpu.memory_space<vmem>>, vector<1x128x128xf32>
    %2 = vector.shape_cast %1 : vector<1x128x128xf32> to vector<128x128xf32>
    %cst = arith.constant dense<0.000000e+00> : vector<8x128xf32>
    %3 = tpu.matmul %0, %2, %cst {dimension_numbers = #tpu.dot_dimension_numbers<[1], [0], [0], [1], [0, 0, 1, 1], [], []>} : vector<8x128xf32>, vector<128x128xf32>, vector<8x128xf32> -> vector<8x128xf32>
    %c0_4 = arith.constant 0 : index
    %c0_5 = arith.constant 0 : index
    %c0_6 = arith.constant 0 : index
    %4 = vector.load %arg3[%c0_4, %c0_5, %c0_6] : memref<1x1x128xf32, #tpu.memory_space<vmem>>, vector<1x1x128xf32>
    %5 = vector.shape_cast %4 : vector<1x1x128xf32> to vector<1x128xf32>
    %6 = vector.broadcast %5 : vector<1x128xf32> to vector<8x128xf32>
    %7 = arith.addf %3, %6 : vector<8x128xf32>
    %c0_7 = arith.constant 0 : index
    %c0_8 = arith.constant 0 : index
    %8 = vector.load %arg4[%c0_7, %c0_8] : memref<8x128xf32, #tpu.memory_space<vmem>>, vector<8x128xf32>
    tpu.vector_store %arg4[%c0_7, %c0_8], %7 {strides = array<i32>} : memref<8x128xf32, #tpu.memory_space<vmem>>, vector<8x128xf32>,
    return
  }
  func.func @transform_0(%arg0: i32) -> (i32, i32) {
    %c0_i32 = arith.constant 0 : i32
    %c0_i32_0 = arith.constant 0 : i32
    return %arg0, %c0_i32 : i32, i32
  }
  func.func @transform_1(%arg0: i32) -> (i32, i32, i32) {
    %c0_i32 = arith.constant 0 : i32
    %c0_i32_0 = arith.constant 0 : i32
    %c0_i32_1 = arith.constant 0 : i32
    %c0_i32_2 = arith.constant 0 : i32
    return %c0_i32, %c0_i32_0, %c0_i32_1 : i32, i32, i32
  }
  func.func @transform_2(%arg0: i32) -> (i32, i32, i32) {
    %c0_i32 = arith.constant 0 : i32
    %c0_i32_0 = arith.constant 0 : i32
    %c0_i32_1 = arith.constant 0 : i32
    %c0_i32_2 = arith.constant 0 : i32
    return %c0_i32, %c0_i32_0, %c0_i32_1 : i32, i32, i32
  }
  func.func @transform_3(%arg0: i32) -> (i32, i32) {
    %c0_i32 = arith.constant 0 : i32
    %c0_i32_0 = arith.constant 0 : i32
    return %arg0, %c0_i32 : i32, i32
  }
}

</mosaic_0001>

<llo_original>
// kernel: tpu_custom_call.1
$region0: #{tpu_custom_call.1}
  #allocation0 [shape = 'u32[]', space=smem, size = 0x4, offset = 0x4, fixed_abs, tag = 'smem constant byte address 0x4 - core index']
  #allocation1 [shape = 'u32[72,128]{1,0:T(1,128)}', space=vmem, size = 0x9000, scoped, tag = 'internal scratch']
  %s0 = inlined_call_operand.hbm [shape: f32[8,128], index: 0, kind: input, shape index: {}]
  %s1 = inlined_call_operand.hbm [shape: f32[1,128,128], index: 1, kind: input, shape index: {}]
  %s2 = inlined_call_operand.vmem [shape: f32[1,1,128], index: 2, kind: input, shape index: {}]
  %s3 = inlined_call_operand.hbm [shape: f32[8,128], index: 3, kind: output, shape index: {}]
  %s4 = sld [smem:[#allocation0]]
  $region30: #{tpu_custom_call.1} parent=0
    _
  %s6 = ssub.s32 1, %s4
  %s7 = scalar_select 0, %s6, %s4
  $region1: #{tpu_custom_call.1} parent=0
    #allocation2 [shape = 'u8[4096]{0}', space=vmem, size = 0x1000, scoped, tag = 'input window, operand 0, single buffered']
    #allocation3 [shape = 's32[1]{0}', space=sflag, size = 0x4, scoped, tag = 'scoped memory for tpu_custom_call.1']
    #allocation4 [shape = 's32[1]{0}', space=sflag, size = 0x4, scoped, tag = 'scoped memory for tpu_custom_call.1']
    #allocation5 [shape = 'u8[65536]{0}', space=vmem, size = 0x10000, scoped, tag = 'input window, operand 1, single buffered']
    #allocation6 [shape = 's32[1]{0}', space=sflag, size = 0x4, scoped, tag = 'scoped memory for tpu_custom_call.1']
    #allocation7 [shape = 'u8[4096]{0}', space=vmem, size = 0x1000, scoped, tag = 'output window, operand 0, single buffered']
    %8 = vsyncpa [#allocation3], 0
    %9 = vsyncpa [#allocation6], 0
    %10 = vsyncpa [#allocation4], 0
    // Predicated region
    $region2: #{tpu_custom_call.1} parent=1 // pred_check
      _
    $region3: #{tpu_custom_call.1} parent=1 // pred_check_branch
      %12 = sbr.rel (0) target = $region5
    $region4: #{tpu_custom_call.1} parent=1 // pred_region
      %14 = vsyncadd [#allocation3], 0
      %s16 = sshll.u32 %s0, 4
      %s17 = int_to_ptr.hbm [resolvable:$true] %s16
      %s18 = sshll.u32 [#allocation2], 4
      %s19 = int_to_ptr.vmem [resolvable:$true] %s18
      %21 = dma.hbm_to_vmem [thread:$0]  %s17, 128, %s19, [#allocation3]
    $region5: #{tpu_custom_call.1} parent=1 // pred_fallthru
      _
    // Predicated region
    $region6: #{tpu_custom_call.1} parent=1 // pred_check
      _
    $region7: #{tpu_custom_call.1} parent=1 // pred_check_branch
      %23 = sbr.rel (0) target = $region9
    $region8: #{tpu_custom_call.1} parent=1 // pred_region
      %25 = vsyncadd [#allocation6], 0
      %s26 = sshll.u32 %s1, 4
      %s27 = int_to_ptr.hbm [resolvable:$true] %s26
      %s28 = sshll.u32 [#allocation5], 4
      %s29 = int_to_ptr.vmem [resolvable:$true] %s28
      %34 = dma.hbm_to_vmem [thread:$0]  %s27, 2048, %s29, [#allocation6], 128, 128, 8
    $region9: #{tpu_custom_call.1} parent=1 // pred_fallthru
      _
    // Predicated region
    $region10: #{tpu_custom_call.1} parent=1 // pred_check
      _
    $region11: #{tpu_custom_call.1} parent=1 // pred_check_branch
      %36 = sbr.rel (0) target = $region13
    $region12: #{tpu_custom_call.1} parent=1 // pred_region
      _
    $region13: #{tpu_custom_call.1} parent=1 // pred_fallthru
      _
    // Predicated region
    $region14: #{tpu_custom_call.1} parent=1 // pred_check
      _
    $region15: #{tpu_custom_call.1} parent=1 // pred_check_branch
      %38 = sbr.rel (0) target = $region17
    $region16: #{tpu_custom_call.1} parent=1 // pred_region
      %40 = dma.done [#allocation3], 128
    $region17: #{tpu_custom_call.1} parent=1 // pred_fallthru
      _
    // Predicated region
    $region18: #{tpu_custom_call.1} parent=1 // pred_check
      _
    $region19: #{tpu_custom_call.1} parent=1 // pred_check_branch
      %42 = sbr.rel (0) target = $region21
    $region20: #{tpu_custom_call.1} parent=1 // pred_region
      %44 = dma.done [#allocation6], 2048
    $region21: #{tpu_custom_call.1} parent=1 // pred_fallthru
      _
    %v45 = vld [vmem:[#allocation2] sm:$0xff]
    %v46 = vld [vmem:[#allocation5] sm:$0xff]
    %v47 = vld [vmem:[#allocation5 + $0x8] sm:$0xff]
    %v48 = vld [vmem:[#allocation5 + $0x10] sm:$0xff]
    %v49 = vld [vmem:[#allocation5 + $0x18] sm:$0xff]
    %v50 = vld [vmem:[#allocation5 + $0x20] sm:$0xff]
    %v51 = vld [vmem:[#allocation5 + $0x28] sm:$0xff]
    %v52 = vld [vmem:[#allocation5 + $0x30] sm:$0xff]
    %v53 = vld [vmem:[#allocation5 + $0x38] sm:$0xff]
    %v54 = vld [vmem:[#allocation5 + $0x40] sm:$0xff]
    %v55 = vld [vmem:[#allocation5 + $0x48] sm:$0xff]
    %v56 = vld [vmem:[#allocation5 + $0x50] sm:$0xff]
    %v57 = vld [vmem:[#allocation5 + $0x58] sm:$0xff]
    %v58 = vld [vmem:[#allocation5 + $0x60] sm:$0xff]
    %v59 = vld [vmem:[#allocation5 + $0x68] sm:$0xff]
    %v60 = vld [vmem:[#allocation5 + $0x70] sm:$0xff]
    %v61 = vld [vmem:[#allocation5 + $0x78] sm:$0xff]
    %v62 = vld [vmem:[%s2] sm:$0x1]
    %v64 = vperm.slane %v62, 0
    %66 = vmatpush.msra.mxu0 %v61
    %67 = vmatpush.msra.mxu0 %v60
    %68 = vmatpush.msra.mxu0 %v59
    %69 = vmatpush.msra.mxu0 %v58
    %70 = vmatpush.msra.mxu0 %v57
    %71 = vmatpush.msra.mxu0 %v56
    %72 = vmatpush.msra.mxu0 %v55
    %73 = vmatpush.msra.mxu0 %v54
    %74 = vmatpush.msra.mxu0 %v53
    %75 = vmatpush.msra.mxu0 %v52
    %76 = vmatpush.msra.mxu0 %v51
    %77 = vmatpush.msra.mxu0 %v50
    %78 = vmatpush.msra.mxu0 %v49
    %79 = vmatpush.msra.mxu0 %v48
    %80 = vmatpush.msra.mxu0 %v47
    %81 = vmatpush.msra.mxu0 %v46
    %82 = vmatmul.f32.gmra.mxu0 %v45
    %v83 = vpop.f32.mrf.mxu0
    %v84 = vadd.f32 %v64, %v83
    %85 = vdwg.mxu0
    %86 = vst [vmem:[#allocation7] sm:$0xff] %v84
    // Predicated region
    $region22: #{tpu_custom_call.1} parent=1 // pred_check
      _
    $region23: #{tpu_custom_call.1} parent=1 // pred_check_branch
      %88 = sbr.rel (0) target = $region25
    $region24: #{tpu_custom_call.1} parent=1 // pred_region
      %90 = vsyncadd [#allocation4], 0
      %s92 = sshll.u32 [#allocation7], 4
      %s93 = int_to_ptr.vmem [resolvable:$true] %s92
      %s94 = sshll.u32 %s3, 4
      %s95 = int_to_ptr.hbm [resolvable:$true] %s94
      %97 = dma.vmem_to_hbm [thread:$0]  %s93, 128, %s95, [#allocation4]
    $region25: #{tpu_custom_call.1} parent=1 // pred_fallthru
      _
    // Predicated region
    $region26: #{tpu_custom_call.1} parent=1 // pred_check
      _
    $region27: #{tpu_custom_call.1} parent=1 // pred_check_branch
      %99 = sbr.rel (0) target = $region29
    $region28: #{tpu_custom_call.1} parent=1 // pred_region
      %101 = dma.done [#allocation4], 128
    $region29: #{tpu_custom_call.1} parent=1 // pred_fallthru
      _
    %102 = vsyncpa [#allocation3], 1
    %103 = vsyncpa [#allocation6], 1
    %104 = vsyncpa [#allocation4], 1

</llo_original>
